<compile_context>
chip_gen: v6e
topology: v6e:2x2x1
jax: 0.10.0
libtpu: 0.0.40
codegen_flags: <defaults>
</compile_context>

<pallas_src>
import math
import functools

import jax
import jax.numpy as jnp
from jax import lax
from jax.experimental import pallas as pl
from jax.experimental.pallas import tpu as pltpu


# dot_general dims for x @ W.T: contract last dim of x with last dim of W
# (avoids an XLU transpose of the (D, D) weight).
_DN_XWT = (((1,), (1,)), ((), ()))


# ---------------------------------------------------------------------------
# Stage 1: fused Q/K/V projections, written head-major [B, h, S, d_k] in bf16.
# Each token is projected exactly once (no recompute across query tiles).
# ---------------------------------------------------------------------------
def _proj_kernel(xq_ref, xk_ref, xv_ref, wq_ref, wk_ref, wv_ref,
                 qp_ref, kp_ref, vp_ref, *, scale: float):
    h, ts, d_k = qp_ref.shape[1], qp_ref.shape[2], qp_ref.shape[3]

    def proj(x_ref, w_ref):
        # bf16 MXU operands, f32 accumulate.
        x = x_ref[0].astype(jnp.bfloat16)                       # (TS, D)
        y = lax.dot_general(x, w_ref[...], _DN_XWT,
                            preferred_element_type=jnp.float32)  # (TS, D) f32
        # One-time relayout into head-major (h, TS, d_k); this keeps the
        # attention kernel free of per-step head transposes.
        return jnp.swapaxes(y.reshape(ts, h, d_k), 0, 1)

    qp_ref[0] = (proj(xq_ref, wq_ref) * scale).astype(qp_ref.dtype)
    kp_ref[0] = proj(xk_ref, wk_ref).astype(kp_ref.dtype)
    vp_ref[0] = proj(xv_ref, wv_ref).astype(vp_ref.dtype)


# ---------------------------------------------------------------------------
# Stage 2: flash-style attention over KV tiles + fused output projection.
# ---------------------------------------------------------------------------
def _attn_kernel(qp_ref, kp_ref, vp_ref, mask_ref, wo_ref, o_ref,
                 m_sc, l_sc, acc_sc):
    kv = pl.program_id(2)

    @pl.when(kv == 0)
    def _():
        m_sc[...] = jnp.full(m_sc.shape, -jnp.inf, dtype=m_sc.dtype)
        l_sc[...] = jnp.zeros(l_sc.shape, dtype=l_sc.dtype)
        acc_sc[...] = jnp.zeros(acc_sc.shape, dtype=acc_sc.dtype)

    q = qp_ref[0]                      # (h, TQ, d_k) bf16, 1/sqrt(d_k) folded
    k = kp_ref[0]                      # (h, TK, d_k) bf16
    v = vp_ref[0]                      # (h, TK, d_k) bf16

    # Batched (per-head) QK^T on the MXU; f32 accumulate.
    s = jnp.einsum("hqd,hkd->hqk", q, k,
                   preferred_element_type=jnp.float32)           # (h, TQ, TK)
    keep = mask_ref[...] != 0                                    # (TQ, TK) int8
    s = jnp.where(keep[None, :, :], s, jnp.float32(-1e9))        # masked_fill

    # Online softmax (all softmax math in f32).
    m_prev = m_sc[...]
    m_new = jnp.maximum(m_prev, jnp.max(s, axis=-1, keepdims=True))
    alpha = jnp.exp(m_prev - m_new)
    p = jnp.exp(s - m_new)
    l_sc[...] = alpha * l_sc[...] + jnp.sum(p, axis=-1, keepdims=True)
    acc_sc[...] = alpha * acc_sc[...] + jnp.einsum(
        "hqk,hkd->hqd", p.astype(jnp.bfloat16), v,
        preferred_element_type=jnp.float32)
    m_sc[...] = m_new
    # TODO(synk): dropout on attention probabilities omitted (eval mode / p=0).

    @pl.when(kv == pl.num_programs(2) - 1)
    def _():
        h, tq, d_k = acc_sc.shape
        ctx = acc_sc[...] * pl.reciprocal(l_sc[...], approx=True)  # (h,TQ,d_k)
        # One relayout per query tile (finalize only), then fused W_o matmul.
        x = jnp.swapaxes(ctx, 0, 1).reshape(tq, h * d_k).astype(jnp.bfloat16)
        o_ref[0] = lax.dot_general(x, wo_ref[...], _DN_XWT,
                                   preferred_element_type=jnp.float32
                                   ).astype(o_ref.dtype)


def _vmem_limit_bytes(per_step_bytes: int) -> int:
    """~2x per-step footprint, capped at 90% of the real device VMEM."""
    try:
        cap = pltpu.get_tpu_info().vmem_capacity_bytes
    except Exception:
        cap = 64 * 1024 * 1024          # v7x worst case
    return int(min(0.9 * cap, max(32 * 1024 * 1024, 2 * per_step_bytes)))


def multi_head_attention(q, k, v, mask, wq, wk, wv, wo, *, h: int,
                         tq: int = 256, tk: int = 256, ts: int = 256):
    """Forward of MultiHeadAttentionBlock (bias-free linears, eval mode)."""
    B, S, D = q.shape
    # TODO(synk): cross-attention with differing q / kv lengths not handled.
    assert k.shape == (B, S, D) and v.shape == (B, S, D)
    assert mask.shape == (S, S)
    assert D % h == 0
    d_k = D // h
    scale = 1.0 / math.sqrt(d_k)

    # Tile sizes. 256 keeps the per-step footprint well inside v7x's 64 MiB;
    # on v5e/v6e (128 MiB VMEM) tq/tk can be swept up to 512.
    TS = S if S <= ts else ts
    TQ = S if S <= tq else tq
    TK = S if S <= tk else tk
    assert S % TS == 0 and S % TQ == 0 and S % TK == 0

    bf16 = jnp.bfloat16
    wq_b, wk_b, wv_b, wo_b = (w.astype(bf16) for w in (wq, wk, wv, wo))
    # Mask is a runtime input (not necessarily causal), so it can't be
    # synthesized from iota in-kernel; stream it as int8 instead of f32 bias.
    mask_i8 = (mask != 0).astype(jnp.int8)

    # ---- Stage 1: projections -> [B, h, S, d_k] bf16 ------------------------
    x_spec = pl.BlockSpec((1, TS, D), lambda b, s: (b, s, 0))
    w1_spec = pl.BlockSpec((D, D), lambda b, s: (0, 0),
                           pipeline_mode=pl.Buffered(1))     # constant block
    p_spec = pl.BlockSpec((1, h, TS, d_k), lambda b, s: (b, 0, s, 0))

    est_proj = (2 * 3 * TS * D * 4          # x blocks (f32, double-buffered)
                + 3 * D * D * 2             # weights (bf16, single-buffered)
                + 2 * 3 * TS * D * 2        # outputs (bf16, double-buffered)
                + 4 * TS * D * 4)           # intermediates (rough)

    qp, kp, vp = pl.pallas_call(
        functools.partial(_proj_kernel, scale=scale),
        out_shape=(jax.ShapeDtypeStruct((B, h, S, d_k), bf16),) * 3,
        grid_spec=pltpu.PrefetchScalarGridSpec(
            num_scalar_prefetch=0,
            grid=(B, S // TS),
            in_specs=[x_spec, x_spec, x_spec, w1_spec, w1_spec, w1_spec],
            out_specs=[p_spec, p_spec, p_spec]),
        compiler_params=pltpu.CompilerParams(
            dimension_semantics=("parallel", "parallel"),
            vmem_limit_bytes=_vmem_limit_bytes(est_proj)),
    )(q, k, v, wq_b, wk_b, wv_b)

    # ---- Stage 2: flash attention + fused output projection -----------------
    n_qt, n_kt = S // TQ, S // TK

    qp_spec = pl.BlockSpec((1, h, TQ, d_k), lambda b, i, j: (b, 0, i, 0))
    kv_spec = pl.BlockSpec((1, h, TK, d_k), lambda b, i, j: (b, 0, j, 0))
    m_spec = pl.BlockSpec((TQ, TK), lambda b, i, j: (i, j))
    wo_spec = pl.BlockSpec((D, D), lambda b, i, j: (0, 0),
                           pipeline_mode=pl.Buffered(1))     # constant block
    o_spec = pl.BlockSpec((1, TQ, D), lambda b, i, j: (b, i, 0))

    est_attn = (2 * TQ * D * 2              # qp block (bf16)
                + 2 * 2 * TK * D * 2        # kp, vp blocks (bf16)
                + 2 * TQ * TK               # mask (int8)
                + D * D * 2                 # wo (bf16, single-buffered)
                + 2 * TQ * D * 4            # output block (f32)
                + (2 * h * TQ + TQ * D) * 4 # m, l, acc scratch
                + 3 * h * TQ * TK * 4)      # score/prob intermediates (rough)

    out = pl.pallas_call(
        _attn_kernel,
        out_shape=jax.ShapeDtypeStruct((B, S, D), q.dtype),
        grid_spec=pltpu.PrefetchScalarGridSpec(
            num_scalar_prefetch=0,
            grid=(B, n_qt, n_kt),
            in_specs=[qp_spec, kv_spec, kv_spec, m_spec, wo_spec],
            out_specs=o_spec,
            scratch_shapes=[pltpu.VMEM((h, TQ, 1), jnp.float32),
                            pltpu.VMEM((h, TQ, 1), jnp.float32),
                            pltpu.VMEM((h, TQ, d_k), jnp.float32)]),
        compiler_params=pltpu.CompilerParams(
            dimension_semantics=("parallel", "parallel", "arbitrary"),
            vmem_limit_bytes=_vmem_limit_bytes(est_attn)),
    )(qp, kp, vp, mask_i8, wo_b)

    return out


def _reference(q, k, v, mask, wq, wk, wv, wo, h):
    # Pure-JAX f32 reference mirroring the PyTorch forward.
    B, S, D = q.shape
    d_k = D // h
    qp = q @ wq.T
    kp = k @ wk.T
    vp = v @ wv.T
    qp = qp.reshape(B, S, h, d_k).transpose(0, 2, 1, 3)
    kp = kp.reshape(B, S, h, d_k).transpose(0, 2, 1, 3)
    vp = vp.reshape(B, S, h, d_k).transpose(0, 2, 1, 3)
    scores = jnp.einsum("bhqd,bhkd->bhqk", qp, kp) / math.sqrt(d_k)
    scores = jnp.where(mask[None, None] == 0, -1e9, scores)
    probs = jax.nn.softmax(scores, axis=-1)
    x = jnp.einsum("bhqk,bhkd->bhqd", probs, vp)
    x = x.transpose(0, 2, 1, 3).reshape(B, S, D)
    return x @ wo.T


if __name__ == "__main__":
    B, S, d_model, h = 2, 8, 32, 4

    key = jax.random.PRNGKey(0)
    kq, kk, kv_, kwq, kwk, kwv, kwo = jax.random.split(key, 7)

    q = jax.random.normal(kq, (B, S, d_model), dtype=jnp.float32)
    k = jax.random.normal(kk, (B, S, d_model), dtype=jnp.float32)
    v = jax.random.normal(kv_, (B, S, d_model), dtype=jnp.float32)

    # Deterministic weight init (same shapes as the nn.Linear layers).
    w_scale = 1.0 / math.sqrt(d_model)
    wq = jax.random.uniform(kwq, (d_model, d_model), jnp.float32, -w_scale, w_scale)
    wk = jax.random.uniform(kwk, (d_model, d_model), jnp.float32, -w_scale, w_scale)
    wv = jax.random.uniform(kwv, (d_model, d_model), jnp.float32, -w_scale, w_scale)
    wo = jax.random.uniform(kwo, (d_model, d_model), jnp.float32, -w_scale, w_scale)

    # Causal mask (1 = keep, 0 = masked), broadcast over batch/heads.
    mask = jnp.tril(jnp.ones((S, S), dtype=jnp.int32))

    out = multi_head_attention(q, k, v, mask, wq, wk, wv, wo, h=h)
    out = jax.block_until_ready(out)

    ref = _reference(q, k, v, mask, wq, wk, wv, wo, h)
    assert out.shape == (B, S, d_model)
    # Tolerance loosened for bf16 MXU operands + approx (EUP) softmax reciprocal.
    err = float(jnp.max(jnp.abs(out - ref)))
    assert jnp.allclose(out, ref, atol=3e-2, rtol=3e-2), err

    print("KERNEL_OK")
</pallas_src>

<mosaic_0001>
module attributes {stable_mosaic.version = 11 : i64} {
  func.func @_proj_kernel(%arg0: i32, %arg1: i32, %arg2: memref<1x8x32xf32, #tpu.memory_space<vmem>>, %arg3: memref<1x8x32xf32, #tpu.memory_space<vmem>>, %arg4: memref<1x8x32xf32, #tpu.memory_space<vmem>>, %arg5: memref<32x32xbf16, #tpu.memory_space<vmem>>, %arg6: memref<32x32xbf16, #tpu.memory_space<vmem>>, %arg7: memref<32x32xbf16, #tpu.memory_space<vmem>>, %arg8: memref<1x4x8x8xbf16, #tpu.memory_space<vmem>>, %arg9: memref<1x4x8x8xbf16, #tpu.memory_space<vmem>>, %arg10: memref<1x4x8x8xbf16, #tpu.memory_space<vmem>>) attributes {dimension_semantics = [#tpu.dimension_semantics<parallel>, #tpu.dimension_semantics<parallel>], iteration_bounds = array<i64: 2, 1>, scalar_prefetch = 0 : i64, scratch_operands = 0 : i64, tpu.core_type = #tpu.core_type<tc>, window_params = [{transform_indices = @transform_0, window_bounds = array<i64: 1, 8, 32>}, {transform_indices = @transform_1, window_bounds = array<i64: 1, 8, 32>}, {transform_indices = @transform_2, window_bounds = array<i64: 1, 8, 32>}, {pipeline_mode = #tpu.pipeline_mode<synchronous>, transform_indices = @transform_3, window_bounds = array<i64: 32, 32>}, {pipeline_mode = #tpu.pipeline_mode<synchronous>, transform_indices = @transform_4, window_bounds = array<i64: 32, 32>}, {pipeline_mode = #tpu.pipeline_mode<synchronous>, transform_indices = @transform_5, window_bounds = array<i64: 32, 32>}, {transform_indices = @transform_6, window_bounds = array<i64: 1, 4, 8, 8>}, {transform_indices = @transform_7, window_bounds = array<i64: 1, 4, 8, 8>}, {transform_indices = @transform_8, window_bounds = array<i64: 1, 4, 8, 8>}]} {
    %c0 = arith.constant 0 : index
    %c0_0 = arith.constant 0 : index
    %c0_1 = arith.constant 0 : index
    %0 = vector.load %arg2[%c0, %c0_0, %c0_1] : memref<1x8x32xf32, #tpu.memory_space<vmem>>, vector<1x8x32xf32>
    %1 = vector.shape_cast %0 : vector<1x8x32xf32> to vector<8x32xf32>
    %2 = arith.truncf %1 : vector<8x32xf32> to vector<8x32xbf16>
    %c0_2 = arith.constant 0 : index
    %c0_3 = arith.constant 0 : index
    %3 = vector.load %arg5[%c0_2, %c0_3] : memref<32x32xbf16, #tpu.memory_space<vmem>>, vector<32x32xbf16>
    %cst = arith.constant dense<0.000000e+00> : vector<8x32xf32>
    %4 = tpu.matmul %2, %3, %cst {dimension_numbers = #tpu.dot_dimension_numbers<[1], [1], [0], [0], [0, 0, 1, 0], [], []>} : vector<8x32xbf16>, vector<32x32xbf16>, vector<8x32xf32> -> vector<8x32xf32>
    %5 = vector.shape_cast %4 : vector<8x32xf32> to vector<8x4x8xf32>
    %6 = tpu.transpose %5, [1, 0, 2] : vector<8x4x8xf32> -> vector<4x8x8xf32>
    %cst_4 = arith.constant 0.353553385 : f32
    %7 = vector.broadcast %cst_4 : f32 to vector<4x8x8xf32>
    %8 = arith.mulf %6, %7 : vector<4x8x8xf32>
    %9 = arith.truncf %8 : vector<4x8x8xf32> to vector<4x8x8xbf16>
    %c0_5 = arith.constant 0 : index
    %c0_6 = arith.constant 0 : index
    %c0_7 = arith.constant 0 : index
    %c0_8 = arith.constant 0 : index
    %10 = vector.load %arg8[%c0_5, %c0_6, %c0_7, %c0_8] : memref<1x4x8x8xbf16, #tpu.memory_space<vmem>>, vector<1x4x8x8xbf16>
    %11 = vector.shape_cast %10 : vector<1x4x8x8xbf16> to vector<4x8x8xbf16>
    %12 = vector.shape_cast %9 : vector<4x8x8xbf16> to vector<1x4x8x8xbf16>
    tpu.vector_store %arg8[%c0_5, %c0_6, %c0_7, %c0_8], %12 {strides = array<i32>} : memref<1x4x8x8xbf16, #tpu.memory_space<vmem>>, vector<1x4x8x8xbf16>,
    %c0_9 = arith.constant 0 : index
    %c0_10 = arith.constant 0 : index
    %c0_11 = arith.constant 0 : index
    %13 = vector.load %arg3[%c0_9, %c0_10, %c0_11] : memref<1x8x32xf32, #tpu.memory_space<vmem>>, vector<1x8x32xf32>
    %14 = vector.shape_cast %13 : vector<1x8x32xf32> to vector<8x32xf32>
    %15 = arith.truncf %14 : vector<8x32xf32> to vector<8x32xbf16>
    %c0_12 = arith.constant 0 : index
    %c0_13 = arith.constant 0 : index
    %16 = vector.load %arg6[%c0_12, %c0_13] : memref<32x32xbf16, #tpu.memory_space<vmem>>, vector<32x32xbf16>
    %cst_14 = arith.constant dense<0.000000e+00> : vector<8x32xf32>
    %17 = tpu.matmul %15, %16, %cst_14 {dimension_numbers = #tpu.dot_dimension_numbers<[1], [1], [0], [0], [0, 0, 1, 0], [], []>} : vector<8x32xbf16>, vector<32x32xbf16>, vector<8x32xf32> -> vector<8x32xf32>
    %18 = vector.shape_cast %17 : vector<8x32xf32> to vector<8x4x8xf32>
    %19 = tpu.transpose %18, [1, 0, 2] : vector<8x4x8xf32> -> vector<4x8x8xf32>
    %20 = arith.truncf %19 : vector<4x8x8xf32> to vector<4x8x8xbf16>
    %c0_15 = arith.constant 0 : index
    %c0_16 = arith.constant 0 : index
    %c0_17 = arith.constant 0 : index
    %c0_18 = arith.constant 0 : index
    %21 = vector.load %arg9[%c0_15, %c0_16, %c0_17, %c0_18] : memref<1x4x8x8xbf16, #tpu.memory_space<vmem>>, vector<1x4x8x8xbf16>
    %22 = vector.shape_cast %21 : vector<1x4x8x8xbf16> to vector<4x8x8xbf16>
    %23 = vector.shape_cast %20 : vector<4x8x8xbf16> to vector<1x4x8x8xbf16>
    tpu.vector_store %arg9[%c0_15, %c0_16, %c0_17, %c0_18], %23 {strides = array<i32>} : memref<1x4x8x8xbf16, #tpu.memory_space<vmem>>, vector<1x4x8x8xbf16>,
    %c0_19 = arith.constant 0 : index
    %c0_20 = arith.constant 0 : index
    %c0_21 = arith.constant 0 : index
    %24 = vector.load %arg4[%c0_19, %c0_20, %c0_21] : memref<1x8x32xf32, #tpu.memory_space<vmem>>, vector<1x8x32xf32>
    %25 = vector.shape_cast %24 : vector<1x8x32xf32> to vector<8x32xf32>
    %26 = arith.truncf %25 : vector<8x32xf32> to vector<8x32xbf16>
    %c0_22 = arith.constant 0 : index
    %c0_23 = arith.constant 0 : index
    %27 = vector.load %arg7[%c0_22, %c0_23] : memref<32x32xbf16, #tpu.memory_space<vmem>>, vector<32x32xbf16>
    %cst_24 = arith.constant dense<0.000000e+00> : vector<8x32xf32>
    %28 = tpu.matmul %26, %27, %cst_24 {dimension_numbers = #tpu.dot_dimension_numbers<[1], [1], [0], [0], [0, 0, 1, 0], [], []>} : vector<8x32xbf16>, vector<32x32xbf16>, vector<8x32xf32> -> vector<8x32xf32>
    %29 = vector.shape_cast %28 : vector<8x32xf32> to vector<8x4x8xf32>
    %30 = tpu.transpose %29, [1, 0, 2] : vector<8x4x8xf32> -> vector<4x8x8xf32>
    %31 = arith.truncf %30 : vector<4x8x8xf32> to vector<4x8x8xbf16>
    %c0_25 = arith.constant 0 : index
    %c0_26 = arith.constant 0 : index
    %c0_27 = arith.constant 0 : index
    %c0_28 = arith.constant 0 : index
    %32 = vector.load %arg10[%c0_25, %c0_26, %c0_27, %c0_28] : memref<1x4x8x8xbf16, #tpu.memory_space<vmem>>, vector<1x4x8x8xbf16>
    %33 = vector.shape_cast %32 : vector<1x4x8x8xbf16> to vector<4x8x8xbf16>
    %34 = vector.shape_cast %31 : vector<4x8x8xbf16> to vector<1x4x8x8xbf16>
    tpu.vector_store %arg10[%c0_25, %c0_26, %c0_27, %c0_28], %34 {strides = array<i32>} : memref<1x4x8x8xbf16, #tpu.memory_space<vmem>>, vector<1x4x8x8xbf16>,
    return
  }
  func.func @transform_0(%arg0: i32, %arg1: i32) -> (i32, i32, i32) {
    %c0_i32 = arith.constant 0 : i32
    %c0_i32_0 = arith.constant 0 : i32
    return %arg0, %arg1, %c0_i32 : i32, i32, i32
  }
  func.func @transform_1(%arg0: i32, %arg1: i32) -> (i32, i32, i32) {
    %c0_i32 = arith.constant 0 : i32
    %c0_i32_0 = arith.constant 0 : i32
    return %arg0, %arg1, %c0_i32 : i32, i32, i32
  }
  func.func @transform_2(%arg0: i32, %arg1: i32) -> (i32, i32, i32) {
    %c0_i32 = arith.constant 0 : i32
    %c0_i32_0 = arith.constant 0 : i32
    return %arg0, %arg1, %c0_i32 : i32, i32, i32
  }
  func.func @transform_3(%arg0: i32, %arg1: i32) -> (i32, i32) {
    %c0_i32 = arith.constant 0 : i32
    %c0_i32_0 = arith.constant 0 : i32
    %c0_i32_1 = arith.constant 0 : i32
    return %c0_i32, %c0_i32_0 : i32, i32
  }
  func.func @transform_4(%arg0: i32, %arg1: i32) -> (i32, i32) {
    %c0_i32 = arith.constant 0 : i32
    %c0_i32_0 = arith.constant 0 : i32
    %c0_i32_1 = arith.constant 0 : i32
    return %c0_i32, %c0_i32_0 : i32, i32
  }
  func.func @transform_5(%arg0: i32, %arg1: i32) -> (i32, i32) {
    %c0_i32 = arith.constant 0 : i32
    %c0_i32_0 = arith.constant 0 : i32
    %c0_i32_1 = arith.constant 0 : i32
    return %c0_i32, %c0_i32_0 : i32, i32
  }
  func.func @transform_6(%arg0: i32, %arg1: i32) -> (i32, i32, i32, i32) {
    %c0_i32 = arith.constant 0 : i32
    %c0_i32_0 = arith.constant 0 : i32
    %c0_i32_1 = arith.constant 0 : i32
    return %arg0, %c0_i32, %arg1, %c0_i32_0 : i32, i32, i32, i32
  }
  func.func @transform_7(%arg0: i32, %arg1: i32) -> (i32, i32, i32, i32) {
    %c0_i32 = arith.constant 0 : i32
    %c0_i32_0 = arith.constant 0 : i32
    %c0_i32_1 = arith.constant 0 : i32
    return %arg0, %c0_i32, %arg1, %c0_i32_0 : i32, i32, i32, i32
  }
  func.func @transform_8(%arg0: i32, %arg1: i32) -> (i32, i32, i32, i32) {
    %c0_i32 = arith.constant 0 : i32
    %c0_i32_0 = arith.constant 0 : i32
    %c0_i32_1 = arith.constant 0 : i32
    return %arg0, %c0_i32, %arg1, %c0_i32_0 : i32, i32, i32, i32
  }
}

</mosaic_0001>

<llo_original>
// kernel: tpu_custom_call.1
$region0: #{tpu_custom_call.1}
  #allocation0 [shape = 'u32[]', space=smem, size = 0x4, offset = 0x4, fixed_abs, tag = 'smem constant byte address 0x4 - core index']
  #allocation1 [shape = 'u32[144,128]{1,0:T(1,128)}', space=vmem, size = 0x12000, scoped, tag = 'internal scratch']
  %s0 = inlined_call_operand.hbm [shape: f32[2,8,32], index: 0, kind: input, shape index: {}]
  %s1 = inlined_call_operand.hbm [shape: f32[2,8,32], index: 1, kind: input, shape index: {}]
  %s2 = inlined_call_operand.hbm [shape: f32[2,8,32], index: 2, kind: input, shape index: {}]
  %s3 = inlined_call_operand.hbm [shape: bf16[32,32], index: 3, kind: input, shape index: {}]
  %s4 = inlined_call_operand.hbm [shape: bf16[32,32], index: 4, kind: input, shape index: {}]
  %s5 = inlined_call_operand.hbm [shape: bf16[32,32], index: 5, kind: input, shape index: {}]
  %s6 = inlined_call_operand.hbm [shape: bf16[2,4,8,8], index: 6, kind: output, shape index: {0}]
  %s7 = inlined_call_operand.hbm [shape: bf16[2,4,8,8], index: 7, kind: output, shape index: {1}]
  %s8 = inlined_call_operand.hbm [shape: bf16[2,4,8,8], index: 8, kind: output, shape index: {2}]
  %9 = xla_tuple %s6, %s7, %s8
  %s10 = sld [smem:[#allocation0]]
  $region97: #{tpu_custom_call.1} parent=0
    _
  %s12 = ssub.s32 1, %s10
  %s13 = scalar_select 0, %s12, %s10
  $region1: #{tpu_custom_call.1} parent=0
    #allocation2 [shape = 'u8[8192]{0}', space=vmem, size = 0x2000, scoped, tag = 'input window, operand 0']
    #allocation3 [shape = 's32[2]{0}', space=sflag, size = 0x8, scoped, tag = 'scoped memory for tpu_custom_call.1']
    #allocation4 [shape = 's32[2]{0}', space=sflag, size = 0x8, scoped, tag = 'scoped memory for tpu_custom_call.1']
    #allocation5 [shape = 'u8[8192]{0}', space=vmem, size = 0x2000, scoped, tag = 'input window, operand 1']
    #allocation6 [shape = 's32[2]{0}', space=sflag, size = 0x8, scoped, tag = 'scoped memory for tpu_custom_call.1']
    #allocation7 [shape = 'u8[8192]{0}', space=vmem, size = 0x2000, scoped, tag = 'input window, operand 2']
    #allocation8 [shape = 'u8[8192]{0}', space=vmem, size = 0x2000, scoped, tag = 'input window, operand 3, single buffered']
    #allocation9 [shape = 's32[1]{0}', space=sflag, size = 0x4, scoped, tag = 'scoped memory for tpu_custom_call.1']
    #allocation10 [shape = 'u8[8192]{0}', space=vmem, size = 0x2000, scoped, tag = 'input window, operand 4, single buffered']
    #allocation11 [shape = 'u8[8192]{0}', space=vmem, size = 0x2000, scoped, tag = 'input window, operand 5, single buffered']
    #allocation12 [shape = 's32[1]{0}', space=sflag, size = 0x4, scoped, tag = 'scoped memory for tpu_custom_call.1']
    #allocation13 [shape = 'u8[16384]{0}', space=vmem, size = 0x4000, scoped, tag = 'output window, operand 0']
    #allocation14 [shape = 'u8[16384]{0}', space=vmem, size = 0x4000, scoped, tag = 'output window, operand 1']
    #allocation15 [shape = 's32[2]{0}', space=sflag, size = 0x8, scoped, tag = 'scoped memory for tpu_custom_call.1']
    #allocation16 [shape = 'u8[16384]{0}', space=vmem, size = 0x4000, scoped, tag = 'output window, operand 2']
    %14 = vsyncpa [#allocation3], 0
    %s15 = scalar_lea.sflag [#allocation3], 1
    %16 = vsyncpa %s15, 0
    %17 = vsyncpa [#allocation6], 0
    %s18 = scalar_lea.sflag [#allocation6], 1
    %19 = vsyncpa %s18, 0
    %20 = vsyncpa [#allocation9], 0
    %21 = vsyncpa [#allocation12], 0
    %22 = vsyncpa [#allocation4], 0
    %s23 = scalar_lea.sflag [#allocation4], 1
    %24 = vsyncpa %s23, 0
    %25 = vsyncpa [#allocation15], 0
    %s26 = scalar_lea.sflag [#allocation15], 1
    %27 = vsyncpa %s26, 0
    loop: start=0, step=1, limit=4
    $region2: #{tpu_custom_call.1} parent=1 // loop_pre_header
      _
    $region3: #{tpu_custom_call.1} parent=1 // loop_header
      %s29 = sphi 0, %s33
      %p30 = scmp.ge.s32.totalorder %s29, 4
      %s36 = sphi 0, %s48
      %s37 = sphi 0, %s44
      %s38 = sphi 0, %s36
      %s39 = sphi 0, %s37
      %s40 = sphi 0, %s38
      %s41 = sphi 0, %s39
      %s53 = sphi 0, %s55
      %s56 = sphi 0, %s53
      %s57 = sphi 0, %s56
      %s73 = sphi 0, %s57
      %s81 = sphi 0, %s83
      %s84 = sphi 0, %s81
      %s85 = sphi 0, %s84
      %s101 = sphi 0, %s85
      %s109 = sphi 0, %s111
      %s112 = sphi 0, %s109
      %s113 = sphi 0, %s112
      %s129 = sphi 0, %s113
      %s133 = sphi 0, %s133
      %s135 = sphi 0, %s133
      %s136 = sphi 0, %s135
      %s150 = sphi 0, %s136
      %s154 = sphi 0, %s154
      %s156 = sphi 0, %s154
      %s157 = sphi 0, %s156
      %s171 = sphi 0, %s157
      %s175 = sphi 0, %s175
      %s177 = sphi 0, %s175
      %s178 = sphi 0, %s177
      %s192 = sphi 0, %s178
      %s200 = sphi 0, %s202
      %s203 = sphi 0, %s200
      %s204 = sphi 0, %s203
      %s220 = sphi 0, %s204
      %s228 = sphi 0, %s230
      %s231 = sphi 0, %s228
      %s232 = sphi 0, %s231
      %s248 = sphi 0, %s232
      %s256 = sphi 0, %s258
      %s259 = sphi 0, %s256
      %s260 = sphi 0, %s259
      %s276 = sphi 0, %s260
    $region4: #{tpu_custom_call.1} parent=1 // loop_header_branch
      %32 = sbr.rel (%p30) target = $region8
    $region5: #{tpu_custom_call.1} parent=1 // loop_body
      %s34 = ssub.s32 %s29, 1
      %s35 = ssub.s32 %s29, 2
      %s42 = sadd.s32 1, %s37
      %p43 = scmp.ge.s32.totalorder %s42, 1
      %s44 = scalar_select %p43, 0, %s42
      %s45 = sadd.s32 1, %s36
      %s46 = scalar_select %p43, %s45, %s36
      %p47 = scmp.ge.s32.totalorder %s46, 2
      %s48 = scalar_select %p47, 0, %s46
      %s49 = ssub.s32 %s36, %s48
      %s50 = ssub.s32 %s37, %s44
      %s51 = sor.u32 %s49, %s50
      %p52 = scmp.eq.s32.totalorder %s51, 0
      %s54 = sadd.s32 %s53, 1
      %s55 = scalar_select %p52, %s53, %s54
      %p58 = pneg %p52
      %p59 = scmp.eq.s32.totalorder %s29, 1
      %p60 = por %p58, %p59
      %p61 = scmp.ne.s32.totalorder %s53, %s56
      %p62 = scmp.eq.s32.totalorder %s29, 0
      %p63 = por %p61, %p62
      %p64 = scmp.ne.s32.totalorder %s53, %s56
      %p65 = scmp.eq.s32.totalorder %s34, 1
      %p66 = por %p64, %p65
      %p67 = scmp.ne.s32.totalorder %s56, %s57
      %p68 = scmp.eq.s32.totalorder %s34, 0
      %p69 = por %p67, %p68
      %p70 = scmp.ne.s32.totalorder %s56, %s57
      %p71 = scmp.eq.s32.totalorder %s35, 1
      %p72 = por %p70, %p71
      %p74 = scmp.ne.s32.totalorder %s57, %s73
      %p75 = scmp.eq.s32.totalorder %s35, 0
      %p76 = por %p74, %p75
      %s77 = ssub.s32 %s36, %s48
      %s78 = ssub.s32 %s37, %s44
      %s79 = sor.u32 %s77, %s78
      %p80 = scmp.eq.s32.totalorder %s79, 0
      %s82 = sadd.s32 %s81, 1
      %s83 = scalar_select %p80, %s81, %s82
      %p86 = pneg %p80
      %p87 = scmp.eq.s32.totalorder %s29, 1
      %p88 = por %p86, %p87
      %p89 = scmp.ne.s32.totalorder %s81, %s84
      %p90 = scmp.eq.s32.totalorder %s29, 0
      %p91 = por %p89, %p90
      %p92 = scmp.ne.s32.totalorder %s81, %s84
      %p93 = scmp.eq.s32.totalorder %s34, 1
      %p94 = por %p92, %p93
      %p95 = scmp.ne.s32.totalorder %s84, %s85
      %p96 = scmp.eq.s32.totalorder %s34, 0
      %p97 = por %p95, %p96
      %p98 = scmp.ne.s32.totalorder %s84, %s85
      %p99 = scmp.eq.s32.totalorder %s35, 1
      %p100 = por %p98, %p99
      %p102 = scmp.ne.s32.totalorder %s85, %s101
      %p103 = scmp.eq.s32.totalorder %s35, 0
      %p104 = por %p102, %p103
      %s105 = ssub.s32 %s36, %s48
      %s106 = ssub.s32 %s37, %s44
      %s107 = sor.u32 %s105, %s106
      %p108 = scmp.eq.s32.totalorder %s107, 0
      %s110 = sadd.s32 %s109, 1
      %s111 = scalar_select %p108, %s109, %s110
      %p114 = pneg %p108
      %p115 = scmp.eq.s32.totalorder %s29, 1
      %p116 = por %p114, %p115
      %p117 = scmp.ne.s32.totalorder %s109, %s112
      %p118 = scmp.eq.s32.totalorder %s29, 0
      %p119 = por %p117, %p118
      %p120 = scmp.ne.s32.totalorder %s109, %s112
      %p121 = scmp.eq.s32.totalorder %s34, 1
      %p122 = por %p120, %p121
      %p123 = scmp.ne.s32.totalorder %s112, %s113
      %p124 = scmp.eq.s32.totalorder %s34, 0
      %p125 = por %p123, %p124
      %p126 = scmp.ne.s32.totalorder %s112, %s113
      %p127 = scmp.eq.s32.totalorder %s35, 1
      %p128 = por %p126, %p127
      %p130 = scmp.ne.s32.totalorder %s113, %s129
      %p131 = scmp.eq.s32.totalorder %s35, 0
      %p132 = por %p130, %p131
      %s134 = sadd.s32 %s133, 1
      %p137 = scmp.eq.s32.totalorder %s29, 1
      %p138 = scmp.ne.s32.totalorder %s133, %s135
      %p139 = scmp.eq.s32.totalorder %s29, 0
      %p140 = por %p138, %p139
      %p141 = scmp.ne.s32.totalorder %s133, %s135
      %p142 = scmp.eq.s32.totalorder %s34, 1
      %p143 = por %p141, %p142
      %p144 = scmp.ne.s32.totalorder %s135, %s136
      %p145 = scmp.eq.s32.totalorder %s34, 0
      %p146 = por %p144, %p145
      %p147 = scmp.ne.s32.totalorder %s135, %s136
      %p148 = scmp.eq.s32.totalorder %s35, 1
      %p149 = por %p147, %p148
      %p151 = scmp.ne.s32.totalorder %s136, %s150
      %p152 = scmp.eq.s32.totalorder %s35, 0
      %p153 = por %p151, %p152
      %s155 = sadd.s32 %s154, 1
      %p158 = scmp.eq.s32.totalorder %s29, 1
      %p159 = scmp.ne.s32.totalorder %s154, %s156
      %p160 = scmp.eq.s32.totalorder %s29, 0
      %p161 = por %p159, %p160
      %p162 = scmp.ne.s32.totalorder %s154, %s156
      %p163 = scmp.eq.s32.totalorder %s34, 1
      %p164 = por %p162, %p163
      %p165 = scmp.ne.s32.totalorder %s156, %s157
      %p166 = scmp.eq.s32.totalorder %s34, 0
      %p167 = por %p165, %p166
      %p168 = scmp.ne.s32.totalorder %s156, %s157
      %p169 = scmp.eq.s32.totalorder %s35, 1
      %p170 = por %p168, %p169
      %p172 = scmp.ne.s32.totalorder %s157, %s171
      %p173 = scmp.eq.s32.totalorder %s35, 0
      %p174 = por %p172, %p173
      %s176 = sadd.s32 %s175, 1
      %p179 = scmp.eq.s32.totalorder %s29, 1
      %p180 = scmp.ne.s32.totalorder %s175, %s177
      %p181 = scmp.eq.s32.totalorder %s29, 0
      %p182 = por %p180, %p181
      %p183 = scmp.ne.s32.totalorder %s175, %s177
      %p184 = scmp.eq.s32.totalorder %s34, 1
      %p185 = por %p183, %p184
      %p186 = scmp.ne.s32.totalorder %s177, %s178
      %p187 = scmp.eq.s32.totalorder %s34, 0
      %p188 = por %p186, %p187
      %p189 = scmp.ne.s32.totalorder %s177, %s178
      %p190 = scmp.eq.s32.totalorder %s35, 1
      %p191 = por %p189, %p190
      %p193 = scmp.ne.s32.totalorder %s178, %s192
      %p194 = scmp.eq.s32.totalorder %s35, 0
      %p195 = por %p193, %p194
      %s196 = ssub.s32 %s36, %s48
      %s197 = ssub.s32 %s37, %s44
      %s198 = sor.u32 %s196, %s197
      %p199 = scmp.eq.s32.totalorder %s198, 0
      %s201 = sadd.s32 %s200, 1
      %s202 = scalar_select %p199, %s200, %s201
      %p205 = pneg %p199
      %p206 = scmp.eq.s32.totalorder %s29, 1
      %p207 = por %p205, %p206
      %p208 = scmp.ne.s32.totalorder %s200, %s203
      %p209 = scmp.eq.s32.totalorder %s29, 0
      %p210 = por %p208, %p209
      %p211 = scmp.ne.s32.totalorder %s200, %s203
      %p212 = scmp.eq.s32.totalorder %s34, 1
      %p213 = por %p211, %p212
      %p214 = scmp.ne.s32.totalorder %s203, %s204
      %p215 = scmp.eq.s32.totalorder %s34, 0
      %p216 = por %p214, %p215
      %p217 = scmp.ne.s32.totalorder %s203, %s204
      %p218 = scmp.eq.s32.totalorder %s35, 1
      %p219 = por %p217, %p218
      %p221 = scmp.ne.s32.totalorder %s204, %s220
      %p222 = scmp.eq.s32.totalorder %s35, 0
      %p223 = por %p221, %p222
      %s224 = ssub.s32 %s36, %s48
      %s225 = ssub.s32 %s37, %s44
      %s226 = sor.u32 %s224, %s225
      %p227 = scmp.eq.s32.totalorder %s226, 0
      %s229 = sadd.s32 %s228, 1
      %s230 = scalar_select %p227, %s228, %s229
      %p233 = pneg %p227
      %p234 = scmp.eq.s32.totalorder %s29, 1
      %p235 = por %p233, %p234
      %p236 = scmp.ne.s32.totalorder %s228, %s231
      %p237 = scmp.eq.s32.totalorder %s29, 0
      %p238 = por %p236, %p237
      %p239 = scmp.ne.s32.totalorder %s228, %s231
      %p240 = scmp.eq.s32.totalorder %s34, 1
      %p241 = por %p239, %p240
      %p242 = scmp.ne.s32.totalorder %s231, %s232
      %p243 = scmp.eq.s32.totalorder %s34, 0
      %p244 = por %p242, %p243
      %p245 = scmp.ne.s32.totalorder %s231, %s232
      %p246 = scmp.eq.s32.totalorder %s35, 1
      %p247 = por %p245, %p246
      %p249 = scmp.ne.s32.totalorder %s232, %s248
      %p250 = scmp.eq.s32.totalorder %s35, 0
      %p251 = por %p249, %p250
      %s252 = ssub.s32 %s36, %s48
      %s253 = ssub.s32 %s37, %s44
      %s254 = sor.u32 %s252, %s253
      %p255 = scmp.eq.s32.totalorder %s254, 0
      %s257 = sadd.s32 %s256, 1
      %s258 = scalar_select %p255, %s256, %s257
      %p261 = pneg %p255
      %p262 = scmp.eq.s32.totalorder %s29, 1
      %p263 = por %p261, %p262
      %p264 = scmp.ne.s32.totalorder %s256, %s259
      %p265 = scmp.eq.s32.totalorder %s29, 0
      %p266 = por %p264, %p265
      %p267 = scmp.ne.s32.totalorder %s256, %s259
      %p268 = scmp.eq.s32.totalorder %s34, 1
      %p269 = por %p267, %p268
      %p270 = scmp.ne.s32.totalorder %s259, %s260
      %p271 = scmp.eq.s32.totalorder %s34, 0
      %p272 = por %p270, %p271
      %p273 = scmp.ne.s32.totalorder %s259, %s260
      %p274 = scmp.eq.s32.totalorder %s35, 1
      %p275 = por %p273, %p274
      %p277 = scmp.ne.s32.totalorder %s260, %s276
      %p278 = scmp.eq.s32.totalorder %s35, 0
      %p279 = por %p277, %p278
      %p280 = scmp.le.s32.totalorder 1, %s29
      %p281 = scmp.lt.s32.totalorder %s29, 3
      %p282 = pnand %p280, %p281
      %p283 = pneg %p282
      // Predicated region
      $region9: #{tpu_custom_call.1} parent=5 // pred_check
        _
      $region10: #{tpu_custom_call.1} parent=5 // pred_check_branch
        %285 = sbr.rel (%p282) target = $region12
      $region11: #{tpu_custom_call.1} parent=5 // pred_region
        %s286 = ssub.s32 %s29, 1
        // Predicated region
        $region13: #{tpu_custom_call.1} parent=11 // pred_check
          %p287 = pneg %p146
        $region14: #{tpu_custom_call.1} parent=11 // pred_check_branch
          %289 = sbr.rel (%p287) target = $region16
        $region15: #{tpu_custom_call.1} parent=11 // pred_region
          %s291 = ssub.s32 256, 256
          %292 = vsyncadd [#allocation9], %s291
          %s293 = sshll.u32 [#allocation8], 4
          %s294 = int_to_ptr.vmem [resolvable:$true] %s293
          %299 = dma.hbm_to_vmem [thread:$0]  %s3, 256, %s294, [#allocation9], 64, 64, 4
        $region16: #{tpu_custom_call.1} parent=11 // pred_fallthru
          _
        // Predicated region
        $region17: #{tpu_custom_call.1} parent=11 // pred_check
          %p300 = pneg %p167
        $region18: #{tpu_custom_call.1} parent=11 // pred_check_branch
          %302 = sbr.rel (%p300) target = $region20
        $region19: #{tpu_custom_call.1} parent=11 // pred_region
          %s304 = ssub.s32 256, 256
          %305 = vsyncadd [#allocation9], %s304
          %s306 = sshll.u32 [#allocation10], 4
          %s307 = int_to_ptr.vmem [resolvable:$true] %s306
          %312 = dma.hbm_to_vmem [thread:$0]  %s4, 256, %s307, [#allocation9], 64, 64, 4
        $region20: #{tpu_custom_call.1} parent=11 // pred_fallthru
          _
        // Predicated region
        $region21: #{tpu_custom_call.1} parent=11 // pred_check
          %p313 = pneg %p188
        $region22: #{tpu_custom_call.1} parent=11 // pred_check_branch
          %315 = sbr.rel (%p313) target = $region24
        $region23: #{tpu_custom_call.1} parent=11 // pred_region
          %s317 = ssub.s32 256, 256
          %318 = vsyncadd [#allocation12], %s317
          %s319 = sshll.u32 [#allocation11], 4
          %s320 = int_to_ptr.vmem [resolvable:$true] %s319
          %325 = dma.hbm_to_vmem [thread:$0]  %s5, 256, %s320, [#allocation12], 64, 64, 4
        $region24: #{tpu_custom_call.1} parent=11 // pred_fallthru
          _
      $region12: #{tpu_custom_call.1} parent=5 // pred_fallthru
        _
      %p326 = scmp.lt.s32.totalorder %s29, 2
      // Predicated region
      $region25: #{tpu_custom_call.1} parent=5 // pred_check
        %p327 = pneg %p326
      $region26: #{tpu_custom_call.1} parent=5 // pred_check_branch
        %329 = sbr.rel (%p327) target = $region28
      $region27: #{tpu_custom_call.1} parent=5 // pred_region
        // Predicated region
        $region29: #{tpu_custom_call.1} parent=27 // pred_check
          %p330 = pneg %p63
        $region30: #{tpu_custom_call.1} parent=27 // pred_check_branch
          %332 = sbr.rel (%p330) target = $region32
        $region31: #{tpu_custom_call.1} parent=27 // pred_region
          %s333 = sand.u32 %s53, 1
          %s334 = scalar_lea.sflag [#allocation3], %s333
          %s335 = sand.u32 %s53, 1
          %s336 = smul.addr %s335, 8
          %s337 = scalar_lea.vmem [#allocation2], %s336
          %s339 = ssub.s32 128, 128
          %340 = vsyncadd %s334, %s339
          %s341 = sadd.s32 %s37, %s36
          %s342 = smul.addr %s341, 128
          %s343 = scalar_lea.hbm %s0, %s342
          %s345 = sshll.u32 %s337, 4
          %s346 = int_to_ptr.vmem [resolvable:$true] %s345
          %348 = dma.hbm_to_vmem [thread:$0]  %s343, 128, %s346, %s334
        $region32: #{tpu_custom_call.1} parent=27 // pred_fallthru
          _
        // Predicated region
        $region33: #{tpu_custom_call.1} parent=27 // pred_check
          %p349 = pneg %p91
        $region34: #{tpu_custom_call.1} parent=27 // pred_check_branch
          %351 = sbr.rel (%p349) target = $region36
        $region35: #{tpu_custom_call.1} parent=27 // pred_region
          %s352 = sand.u32 %s29, 1
          %s353 = scalar_lea.sflag [#allocation6], %s352
          %s354 = sand.u32 %s81, 1
          %s355 = smul.addr %s354, 8
          %s356 = scalar_lea.vmem [#allocation5], %s355
          %s358 = ssub.s32 128, 128
          %359 = vsyncadd %s353, %s358
          %s360 = sadd.s32 %s37, %s36
          %s361 = smul.addr %s360, 128
          %s362 = scalar_lea.hbm %s1, %s361
          %s364 = sshll.u32 %s356, 4
          %s365 = int_to_ptr.vmem [resolvable:$true] %s364
          %367 = dma.hbm_to_vmem [thread:$0]  %s362, 128, %s365, %s353
        $region36: #{tpu_custom_call.1} parent=27 // pred_fallthru
          _
        // Predicated region
        $region37: #{tpu_custom_call.1} parent=27 // pred_check
          %p368 = pneg %p119
        $region38: #{tpu_custom_call.1} parent=27 // pred_check_branch
          %370 = sbr.rel (%p368) target = $region40
        $region39: #{tpu_custom_call.1} parent=27 // pred_region
          %s371 = sand.u32 %s29, 1
          %s372 = scalar_lea.sflag [#allocation6], %s371
          %s373 = sand.u32 %s109, 1
          %s374 = smul.addr %s373, 8
          %s375 = scalar_lea.vmem [#allocation7], %s374
          %s377 = ssub.s32 128, 128
          %378 = vsyncadd %s372, %s377
          %s379 = sadd.s32 %s37, %s36
          %s380 = smul.addr %s379, 128
          %s381 = scalar_lea.hbm %s2, %s380
          %s383 = sshll.u32 %s375, 4
          %s384 = int_to_ptr.vmem [resolvable:$true] %s383
          %386 = dma.hbm_to_vmem [thread:$0]  %s381, 128, %s384, %s372
        $region40: #{tpu_custom_call.1} parent=27 // pred_fallthru
          _
      $region28: #{tpu_custom_call.1} parent=5 // pred_fallthru
        _
      %p387 = scmp.le.s32.totalorder 1, %s29
      %p388 = scmp.lt.s32.totalorder %s29, 3
      %p389 = pnand %p387, %p388
      %p390 = pneg %p389
      // Predicated region
      $region41: #{tpu_custom_call.1} parent=5 // pred_check
        _
      $region42: #{tpu_custom_call.1} parent=5 // pred_check_branch
        %392 = sbr.rel (%p389) target = $region44
      $region43: #{tpu_custom_call.1} parent=5 // pred_region
        %s393 = ssub.s32 %s29, 1
        %s394 = sand.u32 %s56, 1
        %s395 = scalar_lea.sflag [#allocation3], %s394
        %s396 = sand.u32 %s56, 1
        %s397 = smul.addr %s396, 8
        %s398 = scalar_lea.vmem [#allocation2], %s397
        // Predicated region
        $region45: #{tpu_custom_call.1} parent=43 // pred_check
          %p399 = pneg %p69
        $region46: #{tpu_custom_call.1} parent=43 // pred_check_branch
          %401 = sbr.rel (%p399) target = $region48
        $region47: #{tpu_custom_call.1} parent=43 // pred_region
          %402 = dma.done %s395, 128
        $region48: #{tpu_custom_call.1} parent=43 // pred_fallthru
          _
        %s403 = sand.u32 %s34, 1
        %s404 = scalar_lea.sflag [#allocation6], %s403
        %s405 = sand.u32 %s84, 1
        %s406 = smul.addr %s405, 8
        %s407 = scalar_lea.vmem [#allocation5], %s406
        // Predicated region
        $region49: #{tpu_custom_call.1} parent=43 // pred_check
          %p408 = pneg %p97
        $region50: #{tpu_custom_call.1} parent=43 // pred_check_branch
          %410 = sbr.rel (%p408) target = $region52
        $region51: #{tpu_custom_call.1} parent=43 // pred_region
          %411 = dma.done %s404, 128
        $region52: #{tpu_custom_call.1} parent=43 // pred_fallthru
          _
        %s412 = sand.u32 %s34, 1
        %s413 = scalar_lea.sflag [#allocation6], %s412
        %s414 = sand.u32 %s112, 1
        %s415 = smul.addr %s414, 8
        %s416 = scalar_lea.vmem [#allocation7], %s415
        // Predicated region
        $region53: #{tpu_custom_call.1} parent=43 // pred_check
          %p417 = pneg %p125
        $region54: #{tpu_custom_call.1} parent=43 // pred_check_branch
          %419 = sbr.rel (%p417) target = $region56
        $region55: #{tpu_custom_call.1} parent=43 // pred_region
          %420 = dma.done %s413, 128
        $region56: #{tpu_custom_call.1} parent=43 // pred_fallthru
          _
        // Predicated region
        $region57: #{tpu_custom_call.1} parent=43 // pred_check
          %p421 = pneg %p146
        $region58: #{tpu_custom_call.1} parent=43 // pred_check_branch
          %423 = sbr.rel (%p421) target = $region60
        $region59: #{tpu_custom_call.1} parent=43 // pred_region
          %424 = dma.done [#allocation9], 256
        $region60: #{tpu_custom_call.1} parent=43 // pred_fallthru
          _
        // Predicated region
        $region61: #{tpu_custom_call.1} parent=43 // pred_check
          %p425 = pneg %p167
        $region62: #{tpu_custom_call.1} parent=43 // pred_check_branch
          %427 = sbr.rel (%p425) target = $region64
        $region63: #{tpu_custom_call.1} parent=43 // pred_region
          %428 = dma.done [#allocation9], 256
        $region64: #{tpu_custom_call.1} parent=43 // pred_fallthru
          _
        // Predicated region
        $region65: #{tpu_custom_call.1} parent=43 // pred_check
          %p429 = pneg %p188
        $region66: #{tpu_custom_call.1} parent=43 // pred_check_branch
          %431 = sbr.rel (%p429) target = $region68
        $region67: #{tpu_custom_call.1} parent=43 // pred_region
          %432 = dma.done [#allocation12], 256
        $region68: #{tpu_custom_call.1} parent=43 // pred_fallthru
          _
        %s433 = sand.u32 %s56, 1
        %s434 = scalar_lea.sflag [#allocation3], %s433
        %s435 = sand.u32 %s56, 1
        %s436 = smul.addr %s435, 8
        %s437 = scalar_lea.vmem [#allocation2], %s436
        %p438 = pneg %p69
        %p439 = pneg %p66
        %s440 = sand.u32 %s34, 1
        %s441 = scalar_lea.sflag [#allocation6], %s440
        %s442 = sand.u32 %s84, 1
        %s443 = smul.addr %s442, 8
        %s444 = scalar_lea.vmem [#allocation5], %s443
        %p445 = pneg %p97
        %p446 = pneg %p94
        %s447 = sand.u32 %s34, 1
        %s448 = scalar_lea.sflag [#allocation6], %s447
        %s449 = sand.u32 %s112, 1
        %s450 = smul.addr %s449, 8
        %s451 = scalar_lea.vmem [#allocation7], %s450
        %p452 = pneg %p125
        %p453 = pneg %p122
        %p454 = pneg %p146
        %p455 = pneg %p143
        %p456 = pneg %p167
        %p457 = pneg %p164
        %p458 = pneg %p188
        %p459 = pneg %p185
        %p460 = pneg %p216
        %p461 = pneg %p213
        %s462 = sand.u32 %s203, 1
        %s463 = scalar_lea.sflag [#allocation4], %s462
        %s464 = sand.u32 %s203, 1
        %s465 = smul.addr %s464, 16
        %s466 = scalar_lea.vmem [#allocation13], %s465
        %p467 = pneg %p244
        %p468 = pneg %p241
        %s469 = sand.u32 %s34, 1
        %s470 = scalar_lea.sflag [#allocation15], %s469
        %s471 = sand.u32 %s231, 1
        %s472 = smul.addr %s471, 16
        %s473 = scalar_lea.vmem [#allocation14], %s472
        %p474 = pneg %p272
        %p475 = pneg %p269
        %s476 = sand.u32 %s34, 1
        %s477 = scalar_lea.sflag [#allocation15], %s476
        %s478 = sand.u32 %s259, 1
        %s479 = smul.addr %s478, 16
        %s480 = scalar_lea.vmem [#allocation16], %s479
        %v482 = vld [vmem:[%s398] sm:$0xff]
        %v483 = vpack.c.bf16 %v482, %v482
        %v484 = vld [vmem:[#allocation8] sm:$0xf]
        %v485 = vld [vmem:[#allocation8 + $0x4] sm:$0xf]
        %v486 = vld [vmem:[#allocation8 + $0x8] sm:$0xf]
        %v487 = vld [vmem:[#allocation8 + $0xc] sm:$0xf]
        %v492 = vunpack.c.l.b16 %v484
        %v493 = vunpack.c.l.b16 %v485
        %v494 = vunpack.c.l.b16 %v486
        %v495 = vunpack.c.l.b16 %v487
        %v496 = vpack.c.b16 %v493, %v492
        %v497 = vpack.c.b16 %v495, %v494
        %vm498 = vcmask 261120
        %v500 = vsel %vm498, %v483, 0
        %v503 = vsel %vm498, %v496, 0
        %v506 = vsel %vm498, %v497, 0
        %508 = vmatprep.subr.bf16.mxu0 0
        %509 = vmatpush1.bf16.xpose.msra.mxu0 0
        %510 = vmatprep.subr.bf16.mxu0 0
        %511 = vmatpush1.bf16.xpose.msra.mxu0 0
        %512 = vmatprep.subr.bf16.mxu0 0
        %513 = vmatpush1.bf16.xpose.msra.mxu0 0
        %514 = vmatprep.subr.bf16.mxu0 0
        %515 = vmatpush1.bf16.xpose.msra.mxu0 0
        %516 = vmatprep.subr.bf16.mxu0 0
        %517 = vmatpush1.bf16.xpose.msra.mxu0 0
        %518 = vmatprep.subr.bf16.mxu0 0
        %519 = vmatpush1.bf16.xpose.msra.mxu0 0
        %520 = vmatprep.subr.bf16.mxu0 0
        %521 = vmatpush1.bf16.xpose.msra.mxu0 %v506
        %522 = vmatprep.subr.bf16.mxu0 0
        %523 = vmatpush1.bf16.xpose.msra.mxu0 %v503
        %524 = vmatprep.subr.bf16.mxu0 0
        %525 = vmatpush2.bf16.xpose.msra.mxu0 0
        %526 = vmatprep.subr.bf16.mxu0 0
        %527 = vmatpush2.bf16.xpose.msra.mxu0 0
        %528 = vmatprep.subr.bf16.mxu0 0
        %529 = vmatpush2.bf16.xpose.msra.mxu0 0
        %530 = vmatprep.subr.bf16.mxu0 0
        %531 = vmatpush2.bf16.xpose.msra.mxu0 0
        %532 = vmatprep.subr.bf16.mxu0 0
        %533 = vmatpush2.bf16.xpose.msra.mxu0 0
        %534 = vmatprep.subr.bf16.mxu0 0
        %535 = vmatpush2.bf16.xpose.msra.mxu0 0
        %536 = vmatprep.subr.bf16.mxu0 0
        %537 = vmatpush2.bf16.xpose.msra.mxu0 0
        %538 = vmatprep.subr.bf16.mxu0 0
        %539 = vmatpush2.bf16.xpose.msra.mxu0 0
        %540 = vmatprep.mubr.bf16.mxu0 0
        %541 = vmatmul.mubr.bf16.gmra.mxu0 %v500
        %v542 = vpop.f32.mrf.mxu0
        %v543 = vadd.f32 0.0, %v542
        %v544 = vpop.f32.mrf.mxu0
        %v545 = vpop.f32.mrf.mxu0
        %v546 = vpop.f32.mrf.mxu0
        %547 = vdwg.mxu0
        %549 = vrot.lane.b32.xlu0 %v543, 120
        %v550 = vpop.permute.xlu0 %549
        %552 = vrot.lane.b32.xlu0 %v543, 112
        %v553 = vpop.permute.xlu0 %552
        %555 = vrot.lane.b32.xlu0 %v543, 104
        %v556 = vpop.permute.xlu0 %555
        %v558 = vcombine.low %v543, %v553
        %v559 = vcombine.high %v543, %v553
        %v561 = vunpack.c.l.s4 1983009808
        %v562 = vunpack.c.0.s8 %v561
        %v563 = vlaneseq
        %v564 = vshrl.u32 %v563, 7
        %v565 = vsub.s32 %v562, %v564
        %v566 = vrot.slane %v558, %v565
        %v568 = vunpack.c.l.s4 1983009808
        %v569 = vunpack.c.0.s8 %v568
        %v570 = vlaneseq
        %v571 = vshrl.u32 %v570, 7
        %v572 = vsub.s32 %v569, %v571
        %v573 = vrot.slane %v559, %v572
        %v574 = vcombine.low %v550, %v556
        %v575 = vcombine.high %v550, %v556
        %v577 = vunpack.c.l.s4 1983009808
        %v578 = vunpack.c.0.s8 %v577
        %v579 = vlaneseq
        %v580 = vshrl.u32 %v579, 7
        %v581 = vsub.s32 %v578, %v580
        %v582 = vrot.slane %v574, %v581
        %v584 = vunpack.c.l.s4 1983009808
        %v585 = vunpack.c.0.s8 %v584
        %v586 = vlaneseq
        %v587 = vshrl.u32 %v586, 7
        %v588 = vsub.s32 %v585, %v587
        %v589 = vrot.slane %v575, %v588
        %v590 = vcombine.low %v566, %v582
        %v591 = vcombine.high %v566, %v582
        %v593 = vunpack.c.l.s4 1934713408
        %v594 = vunpack.c.0.s8 %v593
        %v595 = vlaneseq
        %v596 = vshrl.u32 %v595, 7
        %v597 = vsub.s32 %v594, %v596
        %v598 = vrot.slane %v590, %v597
        %v600 = vunpack.c.l.s4 1934713408
        %v601 = vunpack.c.0.s8 %v600
        %v602 = vlaneseq
        %v603 = vshrl.u32 %v602, 7
        %v604 = vsub.s32 %v601, %v603
        %v605 = vrot.slane %v591, %v604
        %v606 = vcombine.low %v573, %v589
        %v607 = vcombine.high %v573, %v589
        %v609 = vunpack.c.l.s4 1934713408
        %v610 = vunpack.c.0.s8 %v609
        %v611 = vlaneseq
        %v612 = vshrl.u32 %v611, 7
        %v613 = vsub.s32 %v610, %v612
        %v614 = vrot.slane %v606, %v613
        %v616 = vunpack.c.l.s4 1934713408
        %v617 = vunpack.c.0.s8 %v616
        %v618 = vlaneseq
        %v619 = vshrl.u32 %v618, 7
        %v620 = vsub.s32 %v617, %v619
        %v621 = vrot.slane %v607, %v620
        %v622 = vcombine.high %v598, 0.0
        %v623 = vcombine.high %v605, 0.0
        %v624 = vcombine.high %v614, 0.0
        %v625 = vcombine.high %v621, 0.0
        %v626 = vcombine.low %v598, %v605
        %v628 = vunpack.c.l.s4 1983009808
        %v629 = vunpack.c.0.s8 %v628
        %v630 = vlaneseq
        %v631 = vshrl.u32 %v630, 7
        %v632 = vsub.s32 %v629, %v631
        %v633 = vrot.slane %v626, %v632
        %v634 = vcombine.low %v622, %v623
        %v636 = vunpack.c.l.s4 1983009808
        %v637 = vunpack.c.0.s8 %v636
        %v638 = vlaneseq
        %v639 = vshrl.u32 %v638, 7
        %v640 = vsub.s32 %v637, %v639
        %v641 = vrot.slane %v634, %v640
        %v642 = vcombine.low %v614, %v621
        %v644 = vunpack.c.l.s4 1983009808
        %v645 = vunpack.c.0.s8 %v644
        %v646 = vlaneseq
        %v647 = vshrl.u32 %v646, 7
        %v648 = vsub.s32 %v645, %v647
        %v649 = vrot.slane %v642, %v648
        %v650 = vcombine.low %v624, %v625
        %v652 = vunpack.c.l.s4 1983009808
        %v653 = vunpack.c.0.s8 %v652
        %v654 = vlaneseq
        %v655 = vshrl.u32 %v654, 7
        %v656 = vsub.s32 %v653, %v655
        %v657 = vrot.slane %v650, %v656
        %v658 = vcombine.low %v633, %v641
        %v659 = vcombine.high %v633, %v641
        %v661 = vunpack.c.l.s4 1934713408
        %v662 = vunpack.c.0.s8 %v661
        %v663 = vlaneseq
        %v664 = vshrl.u32 %v663, 7
        %v665 = vsub.s32 %v662, %v664
        %v666 = vrot.slane %v658, %v665
        %v668 = vunpack.c.l.s4 1934713408
        %v669 = vunpack.c.0.s8 %v668
        %v670 = vlaneseq
        %v671 = vshrl.u32 %v670, 7
        %v672 = vsub.s32 %v669, %v671
        %v673 = vrot.slane %v659, %v672
        %v674 = vcombine.low %v649, %v657
        %v675 = vcombine.high %v649, %v657
        %v677 = vunpack.c.l.s4 1934713408
        %v678 = vunpack.c.0.s8 %v677
        %v679 = vlaneseq
        %v680 = vshrl.u32 %v679, 7
        %v681 = vsub.s32 %v678, %v680
        %v682 = vrot.slane %v674, %v681
        %v684 = vunpack.c.l.s4 1934713408
        %v685 = vunpack.c.0.s8 %v684
        %v686 = vlaneseq
        %v687 = vshrl.u32 %v686, 7
        %v688 = vsub.s32 %v685, %v687
        %v689 = vrot.slane %v675, %v688
        %v690 = vcombine.low %v666, %v682
        %v691 = vcombine.high %v666, %v682
        %v692 = vcombine.low %v673, %v689
        %v693 = vcombine.high %v673, %v689
        %v694 = vmul.f32 %v690, 0.35355338
        %v695 = vmul.f32 %v691, 0.35355338
        %v696 = vmul.f32 %v692, 0.35355338
        %v697 = vmul.f32 %v693, 0.35355338
        %v698 = vpack.c.bf16 %v694, %v694
        %v699 = vpack.c.bf16 %v695, %v695
        %v700 = vpack.c.bf16 %v696, %v696
        %v701 = vpack.c.bf16 %v697, %v697
        %vm702 = vcmask 60416
        %703 = vst.msk [vmem:[%s466] sm:$0xf] %vm702, %v698
        %704 = vst.msk [vmem:[%s466 + $0x4] sm:$0xf] %vm702, %v699
        %705 = vst.msk [vmem:[%s466 + $0x8] sm:$0xf] %vm702, %v700
        %706 = vst.msk [vmem:[%s466 + $0xc] sm:$0xf] %vm702, %v701
        %v707 = vld [vmem:[%s407] sm:$0xff]
        %v708 = vpack.c.bf16 %v707, %v707
        %v709 = vld [vmem:[#allocation10] sm:$0xf]
        %v710 = vld [vmem:[#allocation10 + $0x4] sm:$0xf]
        %v711 = vld [vmem:[#allocation10 + $0x8] sm:$0xf]
        %v712 = vld [vmem:[#allocation10 + $0xc] sm:$0xf]
        %v717 = vunpack.c.l.b16 %v709
        %v718 = vunpack.c.l.b16 %v710
        %v719 = vunpack.c.l.b16 %v711
        %v720 = vunpack.c.l.b16 %v712
        %v721 = vpack.c.b16 %v718, %v717
        %v722 = vpack.c.b16 %v720, %v719
        %v724 = vsel %vm498, %v708, 0
        %v727 = vsel %vm498, %v721, 0
        %v730 = vsel %vm498, %v722, 0
        %732 = vmatprep.subr.bf16.mxu0 0
        %733 = vmatpush1.bf16.xpose.msra.mxu0 0
        %734 = vmatprep.subr.bf16.mxu0 0
        %735 = vmatpush1.bf16.xpose.msra.mxu0 0
        %736 = vmatprep.subr.bf16.mxu0 0
        %737 = vmatpush1.bf16.xpose.msra.mxu0 0
        %738 = vmatprep.subr.bf16.mxu0 0
        %739 = vmatpush1.bf16.xpose.msra.mxu0 0
        %740 = vmatprep.subr.bf16.mxu0 0
        %741 = vmatpush1.bf16.xpose.msra.mxu0 0
        %742 = vmatprep.subr.bf16.mxu0 0
        %743 = vmatpush1.bf16.xpose.msra.mxu0 0
        %744 = vmatprep.subr.bf16.mxu0 0
        %745 = vmatpush1.bf16.xpose.msra.mxu0 %v730
        %746 = vmatprep.subr.bf16.mxu0 0
        %747 = vmatpush1.bf16.xpose.msra.mxu0 %v727
        %748 = vmatprep.subr.bf16.mxu0 0
        %749 = vmatpush2.bf16.xpose.msra.mxu0 0
        %750 = vmatprep.subr.bf16.mxu0 0
        %751 = vmatpush2.bf16.xpose.msra.mxu0 0
        %752 = vmatprep.subr.bf16.mxu0 0
        %753 = vmatpush2.bf16.xpose.msra.mxu0 0
        %754 = vmatprep.subr.bf16.mxu0 0
        %755 = vmatpush2.bf16.xpose.msra.mxu0 0
        %756 = vmatprep.subr.bf16.mxu0 0
        %757 = vmatpush2.bf16.xpose.msra.mxu0 0
        %758 = vmatprep.subr.bf16.mxu0 0
        %759 = vmatpush2.bf16.xpose.msra.mxu0 0
        %760 = vmatprep.subr.bf16.mxu0 0
        %761 = vmatpush2.bf16.xpose.msra.mxu0 0
        %762 = vmatprep.subr.bf16.mxu0 0
        %763 = vmatpush2.bf16.xpose.msra.mxu0 0
        %764 = vmatprep.mubr.bf16.mxu0 0
        %765 = vmatmul.mubr.bf16.gmra.mxu0 %v724
        %v766 = vpop.f32.mrf.mxu0
        %v767 = vadd.f32 0.0, %v766
        %v768 = vpop.f32.mrf.mxu0
        %v769 = vpop.f32.mrf.mxu0
        %v770 = vpop.f32.mrf.mxu0
        %771 = vdwg.mxu0
        %773 = vrot.lane.b32.xlu0 %v767, 120
        %v774 = vpop.permute.xlu0 %773
        %776 = vrot.lane.b32.xlu0 %v767, 112
        %v777 = vpop.permute.xlu0 %776
        %779 = vrot.lane.b32.xlu0 %v767, 104
        %v780 = vpop.permute.xlu0 %779
        %v782 = vcombine.low %v767, %v777
        %v783 = vcombine.high %v767, %v777
        %v785 = vunpack.c.l.s4 1983009808
        %v786 = vunpack.c.0.s8 %v785
        %v787 = vlaneseq
        %v788 = vshrl.u32 %v787, 7
        %v789 = vsub.s32 %v786, %v788
        %v790 = vrot.slane %v782, %v789
        %v792 = vunpack.c.l.s4 1983009808
        %v793 = vunpack.c.0.s8 %v792
        %v794 = vlaneseq
        %v795 = vshrl.u32 %v794, 7
        %v796 = vsub.s32 %v793, %v795
        %v797 = vrot.slane %v783, %v796
        %v798 = vcombine.low %v774, %v780
        %v799 = vcombine.high %v774, %v780
        %v801 = vunpack.c.l.s4 1983009808
        %v802 = vunpack.c.0.s8 %v801
        %v803 = vlaneseq
        %v804 = vshrl.u32 %v803, 7
        %v805 = vsub.s32 %v802, %v804
        %v806 = vrot.slane %v798, %v805
        %v808 = vunpack.c.l.s4 1983009808
        %v809 = vunpack.c.0.s8 %v808
        %v810 = vlaneseq
        %v811 = vshrl.u32 %v810, 7
        %v812 = vsub.s32 %v809, %v811
        %v813 = vrot.slane %v799, %v812
        %v814 = vcombine.low %v790, %v806
        %v815 = vcombine.high %v790, %v806
        %v817 = vunpack.c.l.s4 1934713408
        %v818 = vunpack.c.0.s8 %v817
        %v819 = vlaneseq
        %v820 = vshrl.u32 %v819, 7
        %v821 = vsub.s32 %v818, %v820
        %v822 = vrot.slane %v814, %v821
        %v824 = vunpack.c.l.s4 1934713408
        %v825 = vunpack.c.0.s8 %v824
        %v826 = vlaneseq
        %v827 = vshrl.u32 %v826, 7
        %v828 = vsub.s32 %v825, %v827
        %v829 = vrot.slane %v815, %v828
        %v830 = vcombine.low %v797, %v813
        %v831 = vcombine.high %v797, %v813
        %v833 = vunpack.c.l.s4 1934713408
        %v834 = vunpack.c.0.s8 %v833
        %v835 = vlaneseq
        %v836 = vshrl.u32 %v835, 7
        %v837 = vsub.s32 %v834, %v836
        %v838 = vrot.slane %v830, %v837
        %v840 = vunpack.c.l.s4 1934713408
        %v841 = vunpack.c.0.s8 %v840
        %v842 = vlaneseq
        %v843 = vshrl.u32 %v842, 7
        %v844 = vsub.s32 %v841, %v843
        %v845 = vrot.slane %v831, %v844
        %v846 = vcombine.high %v822, 0.0
        %v847 = vcombine.high %v829, 0.0
        %v848 = vcombine.high %v838, 0.0
        %v849 = vcombine.high %v845, 0.0
        %v850 = vcombine.low %v822, %v829
        %v852 = vunpack.c.l.s4 1983009808
        %v853 = vunpack.c.0.s8 %v852
        %v854 = vlaneseq
        %v855 = vshrl.u32 %v854, 7
        %v856 = vsub.s32 %v853, %v855
        %v857 = vrot.slane %v850, %v856
        %v858 = vcombine.low %v846, %v847
        %v860 = vunpack.c.l.s4 1983009808
        %v861 = vunpack.c.0.s8 %v860
        %v862 = vlaneseq
        %v863 = vshrl.u32 %v862, 7
        %v864 = vsub.s32 %v861, %v863
        %v865 = vrot.slane %v858, %v864
        %v866 = vcombine.low %v838, %v845
        %v868 = vunpack.c.l.s4 1983009808
        %v869 = vunpack.c.0.s8 %v868
        %v870 = vlaneseq
        %v871 = vshrl.u32 %v870, 7
        %v872 = vsub.s32 %v869, %v871
        %v873 = vrot.slane %v866, %v872
        %v874 = vcombine.low %v848, %v849
        %v876 = vunpack.c.l.s4 1983009808
        %v877 = vunpack.c.0.s8 %v876
        %v878 = vlaneseq
        %v879 = vshrl.u32 %v878, 7
        %v880 = vsub.s32 %v877, %v879
        %v881 = vrot.slane %v874, %v880
        %v882 = vcombine.low %v857, %v865
        %v883 = vcombine.high %v857, %v865
        %v885 = vunpack.c.l.s4 1934713408
        %v886 = vunpack.c.0.s8 %v885
        %v887 = vlaneseq
        %v888 = vshrl.u32 %v887, 7
        %v889 = vsub.s32 %v886, %v888
        %v890 = vrot.slane %v882, %v889
        %v892 = vunpack.c.l.s4 1934713408
        %v893 = vunpack.c.0.s8 %v892
        %v894 = vlaneseq
        %v895 = vshrl.u32 %v894, 7
        %v896 = vsub.s32 %v893, %v895
        %v897 = vrot.slane %v883, %v896
        %v898 = vcombine.low %v873, %v881
        %v899 = vcombine.high %v873, %v881
        %v901 = vunpack.c.l.s4 1934713408
        %v902 = vunpack.c.0.s8 %v901
        %v903 = vlaneseq
        %v904 = vshrl.u32 %v903, 7
        %v905 = vsub.s32 %v902, %v904
        %v906 = vrot.slane %v898, %v905
        %v908 = vunpack.c.l.s4 1934713408
        %v909 = vunpack.c.0.s8 %v908
        %v910 = vlaneseq
        %v911 = vshrl.u32 %v910, 7
        %v912 = vsub.s32 %v909, %v911
        %v913 = vrot.slane %v899, %v912
        %v914 = vcombine.low %v890, %v906
        %v915 = vcombine.high %v890, %v906
        %v916 = vcombine.low %v897, %v913
        %v917 = vcombine.high %v897, %v913
        %v918 = vpack.c.bf16 %v914, %v914
        %v919 = vpack.c.bf16 %v915, %v915
        %v920 = vpack.c.bf16 %v916, %v916
        %v921 = vpack.c.bf16 %v917, %v917
        %922 = vst.msk [vmem:[%s473] sm:$0xf] %vm702, %v918
        %923 = vst.msk [vmem:[%s473 + $0x4] sm:$0xf] %vm702, %v919
        %924 = vst.msk [vmem:[%s473 + $0x8] sm:$0xf] %vm702, %v920
        %925 = vst.msk [vmem:[%s473 + $0xc] sm:$0xf] %vm702, %v921
        %v926 = vld [vmem:[%s416] sm:$0xff]
        %v927 = vpack.c.bf16 %v926, %v926
        %v928 = vld [vmem:[#allocation11] sm:$0xf]
        %v929 = vld [vmem:[#allocation11 + $0x4] sm:$0xf]
        %v930 = vld [vmem:[#allocation11 + $0x8] sm:$0xf]
        %v931 = vld [vmem:[#allocation11 + $0xc] sm:$0xf]
        %v936 = vunpack.c.l.b16 %v928
        %v937 = vunpack.c.l.b16 %v929
        %v938 = vunpack.c.l.b16 %v930
        %v939 = vunpack.c.l.b16 %v931
        %v940 = vpack.c.b16 %v937, %v936
        %v941 = vpack.c.b16 %v939, %v938
        %v943 = vsel %vm498, %v927, 0
        %v946 = vsel %vm498, %v940, 0
        %v949 = vsel %vm498, %v941, 0
        %951 = vmatprep.subr.bf16.mxu0 0
        %952 = vmatpush1.bf16.xpose.msra.mxu0 0
        %953 = vmatprep.subr.bf16.mxu0 0
        %954 = vmatpush1.bf16.xpose.msra.mxu0 0
        %955 = vmatprep.subr.bf16.mxu0 0
        %956 = vmatpush1.bf16.xpose.msra.mxu0 0
        %957 = vmatprep.subr.bf16.mxu0 0
        %958 = vmatpush1.bf16.xpose.msra.mxu0 0
        %959 = vmatprep.subr.bf16.mxu0 0
        %960 = vmatpush1.bf16.xpose.msra.mxu0 0
        %961 = vmatprep.subr.bf16.mxu0 0
        %962 = vmatpush1.bf16.xpose.msra.mxu0 0
        %963 = vmatprep.subr.bf16.mxu0 0
        %964 = vmatpush1.bf16.xpose.msra.mxu0 %v949
        %965 = vmatprep.subr.bf16.mxu0 0
        %966 = vmatpush1.bf16.xpose.msra.mxu0 %v946
        %967 = vmatprep.subr.bf16.mxu0 0
        %968 = vmatpush2.bf16.xpose.msra.mxu0 0
        %969 = vmatprep.subr.bf16.mxu0 0
        %970 = vmatpush2.bf16.xpose.msra.mxu0 0
        %971 = vmatprep.subr.bf16.mxu0 0
        %972 = vmatpush2.bf16.xpose.msra.mxu0 0
        %973 = vmatprep.subr.bf16.mxu0 0
        %974 = vmatpush2.bf16.xpose.msra.mxu0 0
        %975 = vmatprep.subr.bf16.mxu0 0
        %976 = vmatpush2.bf16.xpose.msra.mxu0 0
        %977 = vmatprep.subr.bf16.mxu0 0
        %978 = vmatpush2.bf16.xpose.msra.mxu0 0
        %979 = vmatprep.subr.bf16.mxu0 0
        %980 = vmatpush2.bf16.xpose.msra.mxu0 0
        %981 = vmatprep.subr.bf16.mxu0 0
        %982 = vmatpush2.bf16.xpose.msra.mxu0 0
        %983 = vmatprep.mubr.bf16.mxu0 0
        %984 = vmatmul.mubr.bf16.gmra.mxu0 %v943
        %v985 = vpop.f32.mrf.mxu0
        %v986 = vadd.f32 0.0, %v985
        %v987 = vpop.f32.mrf.mxu0
        %v988 = vpop.f32.mrf.mxu0
        %v989 = vpop.f32.mrf.mxu0
        %990 = vdwg.mxu0
        %992 = vrot.lane.b32.xlu0 %v986, 120
        %v993 = vpop.permute.xlu0 %992
        %995 = vrot.lane.b32.xlu0 %v986, 112
        %v996 = vpop.permute.xlu0 %995
        %998 = vrot.lane.b32.xlu0 %v986, 104
        %v999 = vpop.permute.xlu0 %998
        %v1001 = vcombine.low %v986, %v996
        %v1002 = vcombine.high %v986, %v996
        %v1004 = vunpack.c.l.s4 1983009808
        %v1005 = vunpack.c.0.s8 %v1004
        %v1006 = vlaneseq
        %v1007 = vshrl.u32 %v1006, 7
        %v1008 = vsub.s32 %v1005, %v1007
        %v1009 = vrot.slane %v1001, %v1008
        %v1011 = vunpack.c.l.s4 1983009808
        %v1012 = vunpack.c.0.s8 %v1011
        %v1013 = vlaneseq
        %v1014 = vshrl.u32 %v1013, 7
        %v1015 = vsub.s32 %v1012, %v1014
        %v1016 = vrot.slane %v1002, %v1015
        %v1017 = vcombine.low %v993, %v999
        %v1018 = vcombine.high %v993, %v999
        %v1020 = vunpack.c.l.s4 1983009808
        %v1021 = vunpack.c.0.s8 %v1020
        %v1022 = vlaneseq
        %v1023 = vshrl.u32 %v1022, 7
        %v1024 = vsub.s32 %v1021, %v1023
        %v1025 = vrot.slane %v1017, %v1024
        %v1027 = vunpack.c.l.s4 1983009808
        %v1028 = vunpack.c.0.s8 %v1027
        %v1029 = vlaneseq
        %v1030 = vshrl.u32 %v1029, 7
        %v1031 = vsub.s32 %v1028, %v1030
        %v1032 = vrot.slane %v1018, %v1031
        %v1033 = vcombine.low %v1009, %v1025
        %v1034 = vcombine.high %v1009, %v1025
        %v1036 = vunpack.c.l.s4 1934713408
        %v1037 = vunpack.c.0.s8 %v1036
        %v1038 = vlaneseq
        %v1039 = vshrl.u32 %v1038, 7
        %v1040 = vsub.s32 %v1037, %v1039
        %v1041 = vrot.slane %v1033, %v1040
        %v1043 = vunpack.c.l.s4 1934713408
        %v1044 = vunpack.c.0.s8 %v1043
        %v1045 = vlaneseq
        %v1046 = vshrl.u32 %v1045, 7
        %v1047 = vsub.s32 %v1044, %v1046
        %v1048 = vrot.slane %v1034, %v1047
        %v1049 = vcombine.low %v1016, %v1032
        %v1050 = vcombine.high %v1016, %v1032
        %v1052 = vunpack.c.l.s4 1934713408
        %v1053 = vunpack.c.0.s8 %v1052
        %v1054 = vlaneseq
        %v1055 = vshrl.u32 %v1054, 7
        %v1056 = vsub.s32 %v1053, %v1055
        %v1057 = vrot.slane %v1049, %v1056
        %v1059 = vunpack.c.l.s4 1934713408
        %v1060 = vunpack.c.0.s8 %v1059
        %v1061 = vlaneseq
        %v1062 = vshrl.u32 %v1061, 7
        %v1063 = vsub.s32 %v1060, %v1062
        %v1064 = vrot.slane %v1050, %v1063
        %v1065 = vcombine.high %v1041, 0.0
        %v1066 = vcombine.high %v1048, 0.0
        %v1067 = vcombine.high %v1057, 0.0
        %v1068 = vcombine.high %v1064, 0.0
        %v1069 = vcombine.low %v1041, %v1048
        %v1071 = vunpack.c.l.s4 1983009808
        %v1072 = vunpack.c.0.s8 %v1071
        %v1073 = vlaneseq
        %v1074 = vshrl.u32 %v1073, 7
        %v1075 = vsub.s32 %v1072, %v1074
        %v1076 = vrot.slane %v1069, %v1075
        %v1077 = vcombine.low %v1065, %v1066
        %v1079 = vunpack.c.l.s4 1983009808
        %v1080 = vunpack.c.0.s8 %v1079
        %v1081 = vlaneseq
        %v1082 = vshrl.u32 %v1081, 7
        %v1083 = vsub.s32 %v1080, %v1082
        %v1084 = vrot.slane %v1077, %v1083
        %v1085 = vcombine.low %v1057, %v1064
        %v1087 = vunpack.c.l.s4 1983009808
        %v1088 = vunpack.c.0.s8 %v1087
        %v1089 = vlaneseq
        %v1090 = vshrl.u32 %v1089, 7
        %v1091 = vsub.s32 %v1088, %v1090
        %v1092 = vrot.slane %v1085, %v1091
        %v1093 = vcombine.low %v1067, %v1068
        %v1095 = vunpack.c.l.s4 1983009808
        %v1096 = vunpack.c.0.s8 %v1095
        %v1097 = vlaneseq
        %v1098 = vshrl.u32 %v1097, 7
        %v1099 = vsub.s32 %v1096, %v1098
        %v1100 = vrot.slane %v1093, %v1099
        %v1101 = vcombine.low %v1076, %v1084
        %v1102 = vcombine.high %v1076, %v1084
        %v1104 = vunpack.c.l.s4 1934713408
        %v1105 = vunpack.c.0.s8 %v1104
        %v1106 = vlaneseq
        %v1107 = vshrl.u32 %v1106, 7
        %v1108 = vsub.s32 %v1105, %v1107
        %v1109 = vrot.slane %v1101, %v1108
        %v1111 = vunpack.c.l.s4 1934713408
        %v1112 = vunpack.c.0.s8 %v1111
        %v1113 = vlaneseq
        %v1114 = vshrl.u32 %v1113, 7
        %v1115 = vsub.s32 %v1112, %v1114
        %v1116 = vrot.slane %v1102, %v1115
        %v1117 = vcombine.low %v1092, %v1100
        %v1118 = vcombine.high %v1092, %v1100
        %v1120 = vunpack.c.l.s4 1934713408
        %v1121 = vunpack.c.0.s8 %v1120
        %v1122 = vlaneseq
        %v1123 = vshrl.u32 %v1122, 7
        %v1124 = vsub.s32 %v1121, %v1123
        %v1125 = vrot.slane %v1117, %v1124
        %v1127 = vunpack.c.l.s4 1934713408
        %v1128 = vunpack.c.0.s8 %v1127
        %v1129 = vlaneseq
        %v1130 = vshrl.u32 %v1129, 7
        %v1131 = vsub.s32 %v1128, %v1130
        %v1132 = vrot.slane %v1118, %v1131
        %v1133 = vcombine.low %v1109, %v1125
        %v1134 = vcombine.high %v1109, %v1125
        %v1135 = vcombine.low %v1116, %v1132
        %v1136 = vcombine.high %v1116, %v1132
        %v1137 = vpack.c.bf16 %v1133, %v1133
        %v1138 = vpack.c.bf16 %v1134, %v1134
        %v1139 = vpack.c.bf16 %v1135, %v1135
        %v1140 = vpack.c.bf16 %v1136, %v1136
        %1141 = vst.msk [vmem:[%s480] sm:$0xf] %vm702, %v1137
        %1142 = vst.msk [vmem:[%s480 + $0x4] sm:$0xf] %vm702, %v1138
        %1143 = vst.msk [vmem:[%s480 + $0x8] sm:$0xf] %vm702, %v1139
        %1144 = vst.msk [vmem:[%s480 + $0xc] sm:$0xf] %vm702, %v1140
        %s1145 = sand.u32 %s203, 1
        %s1146 = scalar_lea.sflag [#allocation4], %s1145
        %s1147 = sand.u32 %s203, 1
        %s1148 = smul.addr %s1147, 16
        %s1149 = scalar_lea.vmem [#allocation13], %s1148
        %s1150 = sand.u32 %s34, 1
        %s1151 = scalar_lea.sflag [#allocation15], %s1150
        %s1152 = sand.u32 %s231, 1
        %s1153 = smul.addr %s1152, 16
        %s1154 = scalar_lea.vmem [#allocation14], %s1153
        %s1155 = sand.u32 %s34, 1
        %s1156 = scalar_lea.sflag [#allocation15], %s1155
        %s1157 = sand.u32 %s259, 1
        %s1158 = smul.addr %s1157, 16
        %s1159 = scalar_lea.vmem [#allocation16], %s1158
        // Predicated region
        $region69: #{tpu_custom_call.1} parent=43 // pred_check
          %p1160 = pneg %p213
        $region70: #{tpu_custom_call.1} parent=43 // pred_check_branch
          %1162 = sbr.rel (%p1160) target = $region72
        $region71: #{tpu_custom_call.1} parent=43 // pred_region
          %s1164 = ssub.s32 256, 256
          %1165 = vsyncadd %s1146, %s1164
          %s1166 = smul.addr %s38, 4
          %s1167 = sadd.s32 %s39, %s1166
          %s1168 = smul.addr %s1167, 64
          %s1169 = scalar_lea.hbm %s6, %s1168
          %s1170 = sshll.u32 %s1149, 4
          %s1171 = int_to_ptr.vmem [resolvable:$true] %s1170
          %1176 = dma.vmem_to_hbm [thread:$0]  %s1171, 256, %s1169, %s1146, 64, 64, 4
        $region72: #{tpu_custom_call.1} parent=43 // pred_fallthru
          _
        // Predicated region
        $region73: #{tpu_custom_call.1} parent=43 // pred_check
          %p1177 = pneg %p241
        $region74: #{tpu_custom_call.1} parent=43 // pred_check_branch
          %1179 = sbr.rel (%p1177) target = $region76
        $region75: #{tpu_custom_call.1} parent=43 // pred_region
          %s1181 = ssub.s32 256, 256
          %1182 = vsyncadd %s1151, %s1181
          %s1183 = smul.addr %s38, 4
          %s1184 = sadd.s32 %s39, %s1183
          %s1185 = smul.addr %s1184, 64
          %s1186 = scalar_lea.hbm %s7, %s1185
          %s1187 = sshll.u32 %s1154, 4
          %s1188 = int_to_ptr.vmem [resolvable:$true] %s1187
          %1193 = dma.vmem_to_hbm [thread:$0]  %s1188, 256, %s1186, %s1151, 64, 64, 4
        $region76: #{tpu_custom_call.1} parent=43 // pred_fallthru
          _
        // Predicated region
        $region77: #{tpu_custom_call.1} parent=43 // pred_check
          %p1194 = pneg %p269
        $region78: #{tpu_custom_call.1} parent=43 // pred_check_branch
          %1196 = sbr.rel (%p1194) target = $region80
        $region79: #{tpu_custom_call.1} parent=43 // pred_region
          %s1198 = ssub.s32 256, 256
          %1199 = vsyncadd %s1156, %s1198
          %s1200 = smul.addr %s38, 4
          %s1201 = sadd.s32 %s39, %s1200
          %s1202 = smul.addr %s1201, 64
          %s1203 = scalar_lea.hbm %s8, %s1202
          %s1204 = sshll.u32 %s1159, 4
          %s1205 = int_to_ptr.vmem [resolvable:$true] %s1204
          %1210 = dma.vmem_to_hbm [thread:$0]  %s1205, 256, %s1203, %s1156, 64, 64, 4
        $region80: #{tpu_custom_call.1} parent=43 // pred_fallthru
          _
      $region44: #{tpu_custom_call.1} parent=5 // pred_fallthru
        _
      %p1211 = scmp.le.s32.totalorder 2, %s29
      // Predicated region
      $region81: #{tpu_custom_call.1} parent=5 // pred_check
        %p1212 = pneg %p1211
      $region82: #{tpu_custom_call.1} parent=5 // pred_check_branch
        %1214 = sbr.rel (%p1212) target = $region84
      $region83: #{tpu_custom_call.1} parent=5 // pred_region
        %s1215 = ssub.s32 %s29, 2
        // Predicated region
        $region85: #{tpu_custom_call.1} parent=83 // pred_check
          %p1216 = pneg %p219
        $region86: #{tpu_custom_call.1} parent=83 // pred_check_branch
          %1218 = sbr.rel (%p1216) target = $region88
        $region87: #{tpu_custom_call.1} parent=83 // pred_region
          %s1219 = sand.u32 %s204, 1
          %s1220 = scalar_lea.sflag [#allocation4], %s1219
          %s1221 = sand.u32 %s204, 1
          %s1222 = smul.addr %s1221, 16
          %s1223 = scalar_lea.vmem [#allocation13], %s1222
          %1224 = dma.done %s1220, 256
        $region88: #{tpu_custom_call.1} parent=83 // pred_fallthru
          _
        // Predicated region
        $region89: #{tpu_custom_call.1} parent=83 // pred_check
          %p1225 = pneg %p247
        $region90: #{tpu_custom_call.1} parent=83 // pred_check_branch
          %1227 = sbr.rel (%p1225) target = $region92
        $region91: #{tpu_custom_call.1} parent=83 // pred_region
          %s1228 = sand.u32 %s35, 1
          %s1229 = scalar_lea.sflag [#allocation15], %s1228
          %s1230 = sand.u32 %s232, 1
          %s1231 = smul.addr %s1230, 16
          %s1232 = scalar_lea.vmem [#allocation14], %s1231
          %1233 = dma.done %s1229, 256
        $region92: #{tpu_custom_call.1} parent=83 // pred_fallthru
          _
        // Predicated region
        $region93: #{tpu_custom_call.1} parent=83 // pred_check
          %p1234 = pneg %p275
        $region94: #{tpu_custom_call.1} parent=83 // pred_check_branch
          %1236 = sbr.rel (%p1234) target = $region96
        $region95: #{tpu_custom_call.1} parent=83 // pred_region
          %s1237 = sand.u32 %s35, 1
          %s1238 = scalar_lea.sflag [#allocation15], %s1237
          %s1239 = sand.u32 %s260, 1
          %s1240 = smul.addr %s1239, 16
          %s1241 = scalar_lea.vmem [#allocation16], %s1240
          %1242 = dma.done %s1238, 256
        $region96: #{tpu_custom_call.1} parent=83 // pred_fallthru
          _
      $region84: #{tpu_custom_call.1} parent=5 // pred_fallthru
        _
    $region6: #{tpu_custom_call.1} parent=1 // loop_footer
      %s33 = sadd.s32 1, %s29
    $region7: #{tpu_custom_call.1} parent=1 // loop_footer_branch
      %28 = sbr.rel target = $region3
    $region8: #{tpu_custom_call.1} parent=1 // loop_exit
      _
    %1243 = vsyncpa [#allocation3], 1
    %s1244 = scalar_lea.sflag [#allocation3], 1
    %1245 = vsyncpa %s1244, 1
    %1246 = vsyncpa [#allocation6], 1
    %s1247 = scalar_lea.sflag [#allocation6], 1
    %1248 = vsyncpa %s1247, 1
    %1249 = vsyncpa [#allocation9], 1
    %1250 = vsyncpa [#allocation12], 1
    %1251 = vsyncpa [#allocation4], 1
    %s1252 = scalar_lea.sflag [#allocation4], 1
    %1253 = vsyncpa %s1252, 1
    %1254 = vsyncpa [#allocation15], 1
    %s1255 = scalar_lea.sflag [#allocation15], 1
    %1256 = vsyncpa %s1255, 1

</llo_original>
